<compile_context>
chip_gen: v5e
topology: v5e:2x2
jax: 0.10.0
libtpu: 0.0.40
codegen_flags: <defaults>
</compile_context>

<pallas_src>
import functools

import jax
import jax.numpy as jnp
from jax.experimental import pallas as pl
from jax.experimental.pallas import tpu as pltpu


def _round_up(x: int, m: int) -> int:
    return (x + m - 1) // m * m


def _sublane_multiple(dtype) -> int:
    """Minimum second-minor tile multiple for this dtype (sublane packing)."""
    bits = jnp.dtype(dtype).itemsize * 8
    if bits >= 32:
        return 8
    if bits == 16:
        return 16
    return 32


def _tpu_info():
    try:
        return pltpu.get_tpu_info()
    except Exception:
        return None


def _get_int_attr(obj, names):
    for name in names:
        v = getattr(obj, name, None)
        if v is None:
            continue
        try:
            v = int(v)
        except (TypeError, ValueError):
            continue
        if v > 0:
            return v
    return None


def _tpu_vmem_capacity_bytes(default: int = 64 * 1024 * 1024) -> int:
    """Physical VMEM per TensorCore; conservative (v7x-sized) fallback."""
    info = _tpu_info()
    if info is not None:
        v = _get_int_attr(info, ("vmem_capacity_bytes", "vmem_size_bytes", "vmem_bytes"))
        if v is not None:
            return v
    return default


def _tpu_core_count() -> int:
    """TensorCores per chip (2 on v7x, 1 on v5e/v6e). Fallback: 1."""
    info = _tpu_info()
    if info is not None:
        v = _get_int_attr(info, ("num_cores", "core_count", "num_tensorcores",
                                 "tensorcore_count", "cores_per_chip"))
        if v is not None:
            return v
    return 1


def _vmem_bytes(tm, H, R, act_bytes, w_bytes, g_bytes):
    """Conservative VMEM footprint for one pipelined grid step."""
    io = 2 * 2 * tm * H * act_bytes                        # double-buffered x-in + out tiles
    weights = 2 * ((H * R + R * H) * w_bytes + H * g_bytes)  # constants (worst-case 2 bufs)
    interm = tm * R * 4 + 5 * tm * H * 4                   # fp32 laurel/norm temporaries + margin
    return io + weights + interm


def _laurel_kernel(x_ref, wl_ref, wr_ref, g_ref, o_ref, *, eps: float):
    # x_ref : (tm, H)   token tile
    # wl_ref: (H, R)    linear_left weight  (in, out), constant across grid
    # wr_ref: (R, H)    linear_right weight (in, out), constant across grid
    # g_ref : (1, H)    post_laurel_norm scale (gamma), constant across grid
    x = x_ref[...]

    # --- low-rank projection (MXU matmuls, fp32 accumulation) ---
    # Cast back to the activation dtype between the two linears, matching the
    # PyTorch module where each linear's output is in the activation dtype.
    laurel = jnp.dot(x, wl_ref[...], preferred_element_type=jnp.float32)
    laurel = laurel.astype(x.dtype)                                            # (tm, R)
    laurel = jnp.dot(laurel, wr_ref[...], preferred_element_type=jnp.float32)  # (tm, H) fp32

    # --- RMSNorm over hidden, fully in fp32 (incl. gamma), one fused
    #     expression and a single downcast (matches reference cast ordering) ---
    inv = jax.lax.rsqrt(jnp.mean(laurel * laurel, axis=-1, keepdims=True) + eps)  # (tm, 1)
    gamma = g_ref[...].astype(jnp.float32)                                        # (1, H)

    # --- learned augmented residual ---
    o_ref[...] = x + (laurel * inv * gamma).astype(x.dtype)


def gemma3n_laurel_block(x, w_left, w_right, norm_weight, *, eps=1e-6,
                         tm_max=None, vmem_budget_bytes=None):
    """x: [..., H]; w_left: [H, R]; w_right: [R, H]; norm_weight: [H]."""
    orig_shape = x.shape
    H = orig_shape[-1]
    R = w_left.shape[-1]
    assert w_left.shape == (H, R), (w_left.shape, H, R)
    assert w_right.shape == (R, H), (w_right.shape, R, H)
    assert norm_weight.size == H, (norm_weight.shape, H)
    # Production Gemma3n hidden sizes are multiples of 128 (lane-dense output
    # stores); other H still works (full-H block) but uses masked partial vst.

    x2d = x.reshape(-1, H)
    T = x2d.shape[0]

    act_bytes = jnp.dtype(x.dtype).itemsize
    w_bytes = jnp.dtype(w_left.dtype).itemsize
    g_bytes = jnp.dtype(norm_weight.dtype).itemsize

    # --- per-chip VMEM budget / max token tile ---
    vmem_cap = _tpu_vmem_capacity_bytes()          # 64 MiB v7x, 128 MiB v5e/v6e
    if vmem_budget_bytes is None:
        vmem_budget_bytes = (vmem_cap * 3) // 4    # ~48 MiB v7x, ~96 MiB v5e/v6e
    if tm_max is None:
        tm_max = 1024 if vmem_cap >= (128 << 20) else 512

    # --- token-tile selection: largest dtype-aligned tile fitting the budget ---
    sub = _sublane_multiple(x.dtype)
    tm = max(sub, (tm_max // sub) * sub)
    while tm > sub and _vmem_bytes(tm, H, R, act_bytes, w_bytes, g_bytes) > vmem_budget_bytes:
        tm = max(sub, ((tm // 2) // sub) * sub)
    # Never use a tile larger than the (sublane-rounded) token count.
    tm = min(tm, _round_up(T, sub))

    # Ragged last block is handled by Pallas (no wrapper pad / slice).
    grid_len = pl.cdiv(T, tm)
    gamma2d = norm_weight.reshape(1, H)

    est = _vmem_bytes(tm, H, R, act_bytes, w_bytes, g_bytes)
    # Raise the scoped VMEM limit (v5e default 16 MiB, v6e 32 MiB) but stay
    # below the chip's physical VMEM.
    vmem_limit_bytes = int(min(max(est + (8 << 20), 32 << 20), vmem_cap - (4 << 20)))

    # Token axis: shard across TensorCores where there are >1 per chip (v7x).
    cores = _tpu_core_count()
    if cores > 1 and grid_len % cores == 0:
        dim_sem = (pltpu.CORE_PARALLEL,)
    else:
        dim_sem = (pltpu.PARALLEL,)

    cost = pl.CostEstimate(
        flops=4 * T * H * R + 6 * T * H,
        transcendentals=T,  # one rsqrt per token row
        bytes_accessed=2 * T * H * act_bytes + 2 * H * R * w_bytes + H * g_bytes,
    )

    kernel = functools.partial(_laurel_kernel, eps=eps)

    def make_call(single_buffer_constants: bool):
        const_kw = {"pipeline_mode": pl.Buffered(1)} if single_buffer_constants else {}
        return pl.pallas_call(
            kernel,
            out_shape=jax.ShapeDtypeStruct((T, H), x.dtype),
            grid_spec=pltpu.PrefetchScalarGridSpec(
                num_scalar_prefetch=0,
                grid=(grid_len,),
                in_specs=[
                    pl.BlockSpec((tm, H), lambda i: (i, 0)),             # x token tile
                    pl.BlockSpec((H, R), lambda i: (0, 0), **const_kw),  # W_left (constant)
                    pl.BlockSpec((R, H), lambda i: (0, 0), **const_kw),  # W_right (constant)
                    pl.BlockSpec((1, H), lambda i: (0, 0), **const_kw),  # gamma (constant)
                ],
                out_specs=pl.BlockSpec((tm, H), lambda i: (i, 0)),       # lane-dense full-H out
            ),
            compiler_params=pltpu.CompilerParams(
                dimension_semantics=dim_sem,
                vmem_limit_bytes=vmem_limit_bytes,
            ),
            cost_estimate=cost,
        )

    try:
        out2d = make_call(True)(x2d, w_left, w_right, gamma2d)
    except Exception:
        # TODO(synk): pl.Buffered(1) single-buffering of the constant weight
        # blocks is a v7x VMEM optimization; retry with default buffering if
        # the installed JAX rejects the pipeline_mode hint.
        out2d = make_call(False)(x2d, w_left, w_right, gamma2d)

    return out2d.reshape(orig_shape)


def _reference(x, w_left, w_right, norm_weight, eps=1e-6):
    laurel = jnp.einsum("...h,hr->...r", x, w_left,
                        preferred_element_type=jnp.float32).astype(x.dtype)
    laurel = jnp.einsum("...r,rh->...h", laurel, w_right,
                        preferred_element_type=jnp.float32)
    var = jnp.mean(laurel * laurel, axis=-1, keepdims=True)
    normed = laurel * jax.lax.rsqrt(var + eps) * norm_weight.astype(jnp.float32)
    return x + normed.astype(x.dtype)


if __name__ == "__main__":
    # Small shapes consistent with the module: hidden_size=32, laurel_rank=8.
    hidden, laurel_rank = 32, 8
    eps = 1e-6

    key = jax.random.PRNGKey(0)
    kx, kl, kr, kx2, kx3 = jax.random.split(key, 5)

    w_left = jax.random.normal(kl, (hidden, laurel_rank), dtype=jnp.float32) * 0.05
    w_right = jax.random.normal(kr, (laurel_rank, hidden), dtype=jnp.float32) * 0.05
    norm_weight = jnp.ones((hidden,), dtype=jnp.float32)

    # Case 1: f32, batch=2, seq=8 -> 16 tokens (exact tile).
    x = jax.random.normal(kx, (2, 8, hidden), dtype=jnp.float32)
    out = jax.block_until_ready(
        gemma3n_laurel_block(x, w_left, w_right, norm_weight, eps=eps))
    ref = _reference(x, w_left, w_right, norm_weight, eps=eps)
    assert out.shape == x.shape and out.dtype == x.dtype
    assert jnp.allclose(out, ref, atol=1e-5, rtol=1e-5), "mismatch vs reference (case 1)"

    # Case 2: f32, batch=3, seq=5 -> 15 tokens, exercises the ragged (masked) tail block.
    x2 = jax.random.normal(kx2, (3, 5, hidden), dtype=jnp.float32)
    out2 = jax.block_until_ready(
        gemma3n_laurel_block(x2, w_left, w_right, norm_weight, eps=eps))
    ref2 = _reference(x2, w_left, w_right, norm_weight, eps=eps)
    assert out2.shape == x2.shape and out2.dtype == x2.dtype
    assert jnp.allclose(out2, ref2, atol=1e-5, rtol=1e-5), "mismatch vs reference (case 2)"

    # Case 3: bf16 activations + weights -> exercises the 16-row sublane rounding path.
    xb = jax.random.normal(kx3, (2, 8, hidden), dtype=jnp.float32).astype(jnp.bfloat16)
    wlb = w_left.astype(jnp.bfloat16)
    wrb = w_right.astype(jnp.bfloat16)
    gb = norm_weight.astype(jnp.bfloat16)
    out3 = jax.block_until_ready(gemma3n_laurel_block(xb, wlb, wrb, gb, eps=eps))
    ref3 = _reference(xb, wlb, wrb, gb, eps=eps)
    assert out3.shape == xb.shape and out3.dtype == xb.dtype
    assert jnp.allclose(out3.astype(jnp.float32), ref3.astype(jnp.float32),
                        atol=3e-2, rtol=3e-2), "mismatch vs reference (case 3)"

    print("KERNEL_OK")
</pallas_src>

<mosaic_0001>
module attributes {stable_mosaic.version = 11 : i64} {
  func.func @_laurel_kernel(%arg0: i32, %arg1: memref<16x32xf32, #tpu.memory_space<vmem>>, %arg2: memref<32x8xf32, #tpu.memory_space<vmem>>, %arg3: memref<8x32xf32, #tpu.memory_space<vmem>>, %arg4: memref<1x32xf32, #tpu.memory_space<vmem>>, %arg5: memref<16x32xf32, #tpu.memory_space<vmem>>) attributes {dimension_semantics = [#tpu.dimension_semantics<parallel>], iteration_bounds = array<i64: 1>, scalar_prefetch = 0 : i64, scratch_operands = 0 : i64, tpu.core_type = #tpu.core_type<tc>, window_params = [{transform_indices = @transform_0, window_bounds = array<i64: 16, 32>}, {pipeline_mode = #tpu.pipeline_mode<synchronous>, transform_indices = @transform_1, window_bounds = array<i64: 32, 8>}, {pipeline_mode = #tpu.pipeline_mode<synchronous>, transform_indices = @transform_2, window_bounds = array<i64: 8, 32>}, {pipeline_mode = #tpu.pipeline_mode<synchronous>, transform_indices = @transform_3, window_bounds = array<i64: 1, 32>}, {transform_indices = @transform_4, window_bounds = array<i64: 16, 32>}]} {
    %c0 = arith.constant 0 : index
    %c0_0 = arith.constant 0 : index
    %0 = vector.load %arg1[%c0, %c0_0] : memref<16x32xf32, #tpu.memory_space<vmem>>, vector<16x32xf32>
    %c0_1 = arith.constant 0 : index
    %c0_2 = arith.constant 0 : index
    %1 = vector.load %arg2[%c0_1, %c0_2] : memref<32x8xf32, #tpu.memory_space<vmem>>, vector<32x8xf32>
    %cst = arith.constant dense<0.000000e+00> : vector<16x8xf32>
    %2 = tpu.matmul %0, %1, %cst {dimension_numbers = #tpu.dot_dimension_numbers<[1], [0], [0], [1], [0, 0, 1, 1], [], []>} : vector<16x32xf32>, vector<32x8xf32>, vector<16x8xf32> -> vector<16x8xf32>
    %c0_3 = arith.constant 0 : index
    %c0_4 = arith.constant 0 : index
    %3 = vector.load %arg3[%c0_3, %c0_4] : memref<8x32xf32, #tpu.memory_space<vmem>>, vector<8x32xf32>
    %cst_5 = arith.constant dense<0.000000e+00> : vector<16x32xf32>
    %4 = tpu.matmul %2, %3, %cst_5 {dimension_numbers = #tpu.dot_dimension_numbers<[1], [0], [0], [1], [0, 0, 1, 1], [], []>} : vector<16x8xf32>, vector<8x32xf32>, vector<16x32xf32> -> vector<16x32xf32>
    %5 = arith.mulf %4, %4 : vector<16x32xf32>
    %cst_6 = arith.constant dense<0.000000e+00> : vector<16xf32>
    %6 = vector.multi_reduction <add>, %5, %cst_6 [1] : vector<16x32xf32> to vector<16xf32>
    %7 = vector.shape_cast %6 : vector<16xf32> to vector<16x1xf32>
    %cst_7 = arith.constant 3.200000e+01 : f32
    %8 = vector.broadcast %cst_7 : f32 to vector<16x1xf32>
    %9 = arith.divf %7, %8 : vector<16x1xf32>
    %cst_8 = arith.constant 9.99999997E-7 : f32
    %10 = vector.broadcast %cst_8 : f32 to vector<16x1xf32>
    %11 = arith.addf %9, %10 : vector<16x1xf32>
    %12 = math.rsqrt %11 : vector<16x1xf32>
    %c0_9 = arith.constant 0 : index
    %c0_10 = arith.constant 0 : index
    %13 = vector.load %arg4[%c0_9, %c0_10] : memref<1x32xf32, #tpu.memory_space<vmem>>, vector<1x32xf32>
    %14 = vector.broadcast %12 : vector<16x1xf32> to vector<16x32xf32>
    %15 = arith.mulf %4, %14 : vector<16x32xf32>
    %16 = vector.broadcast %13 : vector<1x32xf32> to vector<16x32xf32>
    %17 = arith.mulf %15, %16 : vector<16x32xf32>
    %18 = arith.addf %0, %17 : vector<16x32xf32>
    %c0_11 = arith.constant 0 : index
    %c0_12 = arith.constant 0 : index
    %19 = vector.load %arg5[%c0_11, %c0_12] : memref<16x32xf32, #tpu.memory_space<vmem>>, vector<16x32xf32>
    tpu.vector_store %arg5[%c0_11, %c0_12], %18 {strides = array<i32>} : memref<16x32xf32, #tpu.memory_space<vmem>>, vector<16x32xf32>,
    return
  }
  func.func @transform_0(%arg0: i32) -> (i32, i32) {
    %c0_i32 = arith.constant 0 : i32
    %c0_i32_0 = arith.constant 0 : i32
    return %arg0, %c0_i32 : i32, i32
  }
  func.func @transform_1(%arg0: i32) -> (i32, i32) {
    %c0_i32 = arith.constant 0 : i32
    %c0_i32_0 = arith.constant 0 : i32
    %c0_i32_1 = arith.constant 0 : i32
    return %c0_i32, %c0_i32_0 : i32, i32
  }
  func.func @transform_2(%arg0: i32) -> (i32, i32) {
    %c0_i32 = arith.constant 0 : i32
    %c0_i32_0 = arith.constant 0 : i32
    %c0_i32_1 = arith.constant 0 : i32
    return %c0_i32, %c0_i32_0 : i32, i32
  }
  func.func @transform_3(%arg0: i32) -> (i32, i32) {
    %c0_i32 = arith.constant 0 : i32
    %c0_i32_0 = arith.constant 0 : i32
    %c0_i32_1 = arith.constant 0 : i32
    return %c0_i32, %c0_i32_0 : i32, i32
  }
  func.func @transform_4(%arg0: i32) -> (i32, i32) {
    %c0_i32 = arith.constant 0 : i32
    %c0_i32_0 = arith.constant 0 : i32
    return %arg0, %c0_i32 : i32, i32
  }
}

module attributes {stable_mosaic.version = 11 : i64} {
  func.func @_laurel_kernel(%arg0: i32, %arg1: memref<16x32xf32, #tpu.memory_space<vmem>>, %arg2: memref<32x8xf32, #tpu.memory_space<vmem>>, %arg3: memref<8x32xf32, #tpu.memory_space<vmem>>, %arg4: memref<1x32xf32, #tpu.memory_space<vmem>>, %arg5: memref<16x32xf32, #tpu.memory_space<vmem>>) attributes {dimension_semantics = [#tpu.dimension_semantics<parallel>], iteration_bounds = array<i64: 1>, scalar_prefetch = 0 : i64, scratch_operands = 0 : i64, tpu.core_type = #tpu.core_type<tc>, window_params = [{transform_indices = @transform_0, window_bounds = array<i64: 16, 32>}, {pipeline_mode = #tpu.pipeline_mode<synchronous>, transform_indices = @transform_1, window_bounds = array<i64: 32, 8>}, {pipeline_mode = #tpu.pipeline_mode<synchronous>, transform_indices = @transform_2, window_bounds = array<i64: 8, 32>}, {pipeline_mode = #tpu.pipeline_mode<synchronous>, transform_indices = @transform_3, window_bounds = array<i64: 1, 32>}, {transform_indices = @transform_4, window_bounds = array<i64: 16, 32>}]} {
    %c0 = arith.constant 0 : index
    %c0_0 = arith.constant 0 : index
    %0 = vector.load %arg1[%c0, %c0_0] : memref<16x32xf32, #tpu.memory_space<vmem>>, vector<16x32xf32>
    %c0_1 = arith.constant 0 : index
    %c0_2 = arith.constant 0 : index
    %1 = vector.load %arg2[%c0_1, %c0_2] : memref<32x8xf32, #tpu.memory_space<vmem>>, vector<32x8xf32>
    %cst = arith.constant dense<0.000000e+00> : vector<16x8xf32>
    %2 = tpu.matmul %0, %1, %cst {dimension_numbers = #tpu.dot_dimension_numbers<[1], [0], [0], [1], [0, 0, 1, 1], [], []>} : vector<16x32xf32>, vector<32x8xf32>, vector<16x8xf32> -> vector<16x8xf32>
    %c0_3 = arith.constant 0 : index
    %c0_4 = arith.constant 0 : index
    %3 = vector.load %arg3[%c0_3, %c0_4] : memref<8x32xf32, #tpu.memory_space<vmem>>, vector<8x32xf32>
    %cst_5 = arith.constant dense<0.000000e+00> : vector<16x32xf32>
    %4 = tpu.matmul %2, %3, %cst_5 {dimension_numbers = #tpu.dot_dimension_numbers<[1], [0], [0], [1], [0, 0, 1, 1], [], []>} : vector<16x8xf32>, vector<8x32xf32>, vector<16x32xf32> -> vector<16x32xf32>
    %5 = arith.mulf %4, %4 : vector<16x32xf32>
    %cst_6 = arith.constant dense<0.000000e+00> : vector<16xf32>
    %6 = vector.multi_reduction <add>, %5, %cst_6 [1] : vector<16x32xf32> to vector<16xf32>
    %7 = vector.shape_cast %6 : vector<16xf32> to vector<16x1xf32>
    %cst_7 = arith.constant 3.200000e+01 : f32
    %8 = vector.broadcast %cst_7 : f32 to vector<16x1xf32>
    %9 = arith.divf %7, %8 : vector<16x1xf32>
    %cst_8 = arith.constant 9.99999997E-7 : f32
    %10 = vector.broadcast %cst_8 : f32 to vector<16x1xf32>
    %11 = arith.addf %9, %10 : vector<16x1xf32>
    %12 = math.rsqrt %11 : vector<16x1xf32>
    %c0_9 = arith.constant 0 : index
    %c0_10 = arith.constant 0 : index
    %13 = vector.load %arg4[%c0_9, %c0_10] : memref<1x32xf32, #tpu.memory_space<vmem>>, vector<1x32xf32>
    %14 = vector.broadcast %12 : vector<16x1xf32> to vector<16x32xf32>
    %15 = arith.mulf %4, %14 : vector<16x32xf32>
    %16 = vector.broadcast %13 : vector<1x32xf32> to vector<16x32xf32>
    %17 = arith.mulf %15, %16 : vector<16x32xf32>
    %18 = arith.addf %0, %17 : vector<16x32xf32>
    %c0_11 = arith.constant 0 : index
    %c0_12 = arith.constant 0 : index
    %19 = vector.load %arg5[%c0_11, %c0_12] : memref<16x32xf32, #tpu.memory_space<vmem>>, vector<16x32xf32>
    tpu.vector_store %arg5[%c0_11, %c0_12], %18 {strides = array<i32>} : memref<16x32xf32, #tpu.memory_space<vmem>>, vector<16x32xf32>,
    return
  }
  func.func @transform_0(%arg0: i32) -> (i32, i32) {
    %c0_i32 = arith.constant 0 : i32
    %c0_i32_0 = arith.constant 0 : i32
    return %arg0, %c0_i32 : i32, i32
  }
  func.func @transform_1(%arg0: i32) -> (i32, i32) {
    %c0_i32 = arith.constant 0 : i32
    %c0_i32_0 = arith.constant 0 : i32
    %c0_i32_1 = arith.constant 0 : i32
    return %c0_i32, %c0_i32_0 : i32, i32
  }
  func.func @transform_2(%arg0: i32) -> (i32, i32) {
    %c0_i32 = arith.constant 0 : i32
    %c0_i32_0 = arith.constant 0 : i32
    %c0_i32_1 = arith.constant 0 : i32
    return %c0_i32, %c0_i32_0 : i32, i32
  }
  func.func @transform_3(%arg0: i32) -> (i32, i32) {
    %c0_i32 = arith.constant 0 : i32
    %c0_i32_0 = arith.constant 0 : i32
    %c0_i32_1 = arith.constant 0 : i32
    return %c0_i32, %c0_i32_0 : i32, i32
  }
  func.func @transform_4(%arg0: i32) -> (i32, i32) {
    %c0_i32 = arith.constant 0 : i32
    %c0_i32_0 = arith.constant 0 : i32
    return %arg0, %c0_i32 : i32, i32
  }
}

</mosaic_0001>

<llo_original>
// kernel: tpu_custom_call.1
$region0: #{tpu_custom_call.1}
  #allocation0 [shape = 'u32[]', space=smem, size = 0x4, offset = 0x4, fixed_abs, tag = 'smem constant byte address 0x4 - core index']
  #allocation1 [shape = 'u32[72,128]{1,0:T(1,128)}', space=vmem, size = 0x9000, scoped, tag = 'internal scratch']
  %s0 = inlined_call_operand.vmem [shape: f32[16,32], index: 0, kind: input, shape index: {}]
  %s1 = inlined_call_operand.vmem [shape: f32[32,8], index: 1, kind: input, shape index: {}]
  %s2 = inlined_call_operand.vmem [shape: f32[8,32], index: 2, kind: input, shape index: {}]
  %s3 = inlined_call_operand.vmem [shape: f32[1,32], index: 3, kind: input, shape index: {}]
  %s4 = inlined_call_operand.hbm [shape: f32[16,32], index: 4, kind: output, shape index: {}]
  %s5 = sld [smem:[#allocation0]]
  $region26: #{tpu_custom_call.1} parent=0
    _
  %s7 = ssub.s32 1, %s5
  %s8 = scalar_select 0, %s7, %s5
  $region1: #{tpu_custom_call.1} parent=0
    #allocation2 [shape = 'u8[8192]{0}', space=vmem, size = 0x2000, scoped, tag = 'output window, operand 0, single buffered']
    #allocation3 [shape = 's32[1]{0}', space=sflag, size = 0x4, scoped, tag = 'scoped memory for tpu_custom_call.1']
    %9 = vsyncpa [#allocation3], 0
    // Predicated region
    $region2: #{tpu_custom_call.1} parent=1 // pred_check
      _
    $region3: #{tpu_custom_call.1} parent=1 // pred_check_branch
      %11 = sbr.rel (0) target = $region5
    $region4: #{tpu_custom_call.1} parent=1 // pred_region
      _
    $region5: #{tpu_custom_call.1} parent=1 // pred_fallthru
      _
    // Predicated region
    $region6: #{tpu_custom_call.1} parent=1 // pred_check
      _
    $region7: #{tpu_custom_call.1} parent=1 // pred_check_branch
      %13 = sbr.rel (0) target = $region9
    $region8: #{tpu_custom_call.1} parent=1 // pred_region
      _
    $region9: #{tpu_custom_call.1} parent=1 // pred_fallthru
      _
    // Predicated region
    $region10: #{tpu_custom_call.1} parent=1 // pred_check
      _
    $region11: #{tpu_custom_call.1} parent=1 // pred_check_branch
      %15 = sbr.rel (0) target = $region13
    $region12: #{tpu_custom_call.1} parent=1 // pred_region
      _
    $region13: #{tpu_custom_call.1} parent=1 // pred_fallthru
      _
    // Predicated region
    $region14: #{tpu_custom_call.1} parent=1 // pred_check
      _
    $region15: #{tpu_custom_call.1} parent=1 // pred_check_branch
      %17 = sbr.rel (0) target = $region17
    $region16: #{tpu_custom_call.1} parent=1 // pred_region
      _
    $region17: #{tpu_custom_call.1} parent=1 // pred_fallthru
      _
    %v18 = vld [vmem:[%s0] sm:$0xff]
    %v19 = vld [vmem:[%s0 + $0x8] sm:$0xff]
    %v20 = vld [vmem:[%s1] sm:$0xff]
    %v21 = vld [vmem:[%s1 + $0x8] sm:$0xff]
    %v22 = vld [vmem:[%s1 + $0x10] sm:$0xff]
    %v23 = vld [vmem:[%s1 + $0x18] sm:$0xff]
    %vm24 = vcmask 261120
    %v26 = vsel %vm24, %v18, 0
    %v29 = vsel %vm24, %v19, 0
    %31 = vmatpush.msra.mxu0 0.0
    %32 = vmatpush.msra.mxu0 0.0
    %33 = vmatpush.msra.mxu0 0.0
    %34 = vmatpush.msra.mxu0 0.0
    %35 = vmatpush.msra.mxu0 0.0
    %36 = vmatpush.msra.mxu0 0.0
    %37 = vmatpush.msra.mxu0 0.0
    %38 = vmatpush.msra.mxu0 0.0
    %39 = vmatpush.msra.mxu0 0.0
    %40 = vmatpush.msra.mxu0 0.0
    %41 = vmatpush.msra.mxu0 0.0
    %42 = vmatpush.msra.mxu0 0.0
    %43 = vmatpush.msra.mxu0 %v23
    %44 = vmatpush.msra.mxu0 %v22
    %45 = vmatpush.msra.mxu0 %v21
    %46 = vmatpush.msra.mxu0 %v20
    %47 = vmatmul.f32.gmra.mxu0 %v26
    %v48 = vpop.f32.mrf.mxu0
    %v49 = vadd.f32 0.0, %v48
    %50 = vmatmul.f32.gmra.mxu0 %v29
    %v51 = vpop.f32.mrf.mxu0
    %v52 = vadd.f32 0.0, %v51
    %53 = vdwg.mxu0
    %v54 = vld [vmem:[%s2] sm:$0xff]
    %vm55 = vcmask 64512
    %v57 = vsel %vm55, %v49, 0
    %v60 = vsel %vm55, %v52, 0
    %62 = vmatpush.msra.mxu0 0.0
    %63 = vmatpush.msra.mxu0 0.0
    %64 = vmatpush.msra.mxu0 0.0
    %65 = vmatpush.msra.mxu0 0.0
    %66 = vmatpush.msra.mxu0 0.0
    %67 = vmatpush.msra.mxu0 0.0
    %68 = vmatpush.msra.mxu0 0.0
    %69 = vmatpush.msra.mxu0 0.0
    %70 = vmatpush.msra.mxu0 0.0
    %71 = vmatpush.msra.mxu0 0.0
    %72 = vmatpush.msra.mxu0 0.0
    %73 = vmatpush.msra.mxu0 0.0
    %74 = vmatpush.msra.mxu0 0.0
    %75 = vmatpush.msra.mxu0 0.0
    %76 = vmatpush.msra.mxu0 0.0
    %77 = vmatpush.msra.mxu0 %v54
    %78 = vmatmul.f32.gmra.mxu0 %v57
    %v79 = vpop.f32.mrf.mxu0
    %v80 = vadd.f32 0.0, %v79
    %81 = vmatmul.f32.gmra.mxu0 %v60
    %v82 = vpop.f32.mrf.mxu0
    %v83 = vadd.f32 0.0, %v82
    %84 = vdwg.mxu0
    %v85 = vmul.f32 %v80, %v80
    %v86 = vmul.f32 %v83, %v83
    %v87 = vsel %vm24, %v85, 0.0
    %88 = vadd.xlane.f32.xlu0 %v87
    %v89 = vpop.xlane.xlu0 %88
    %v90 = vsel %vm24, %v86, 0.0
    %91 = vadd.xlane.f32.xlu0 %v90
    %v92 = vpop.xlane.xlu0 %91
    %v93 = vrcp.pop 32.0
    %v94 = vmul.f32 32.0, %v93
    %v95 = vsub.f32 1.0, %v94
    %v96 = vmul.f32 %v93, %v95
    %v97 = vadd.f32 %v93, %v96
    %vm98 = vweird.f32 %v93
    %v99 = vsel %vm98, %v93, %v97
    %v100 = vmul.f32 %v89, %v99
    %v101 = vmul.f32 %v92, %v99
    %v102 = vadd.f32 %v100, 1e-06
    %v103 = vadd.f32 %v101, 1e-06
    %v104 = vrsqrt.pop %v102
    %v105 = vmul.f32 %v104, %v102
    %v106 = vmul.f32 %v105, %v104
    %v107 = vmul.f32 0.5, %v106
    %v108 = vsub.f32 1.5, %v107
    %v109 = vmul.f32 %v104, %v108
    %vm110 = vweird.f32 %v102
    %vm111 = vweird.f32 %v104
    %vm112 = vmor %vm110, %vm111
    %v113 = vsel %vm112, %v104, %v109
    %v114 = vrsqrt.pop %v103
    %v115 = vmul.f32 %v114, %v103
    %v116 = vmul.f32 %v115, %v114
    %v117 = vmul.f32 0.5, %v116
    %v118 = vsub.f32 1.5, %v117
    %v119 = vmul.f32 %v114, %v118
    %vm120 = vweird.f32 %v103
    %vm121 = vweird.f32 %v114
    %vm122 = vmor %vm120, %vm121
    %v123 = vsel %vm122, %v114, %v119
    %v124 = vld [vmem:[%s3] sm:$0x1]
    %v125 = vmul.f32 %v80, %v113
    %v126 = vmul.f32 %v83, %v123
    %v128 = vperm.slane %v124, 0
    %v130 = vmul.f32 %v125, %v128
    %v131 = vmul.f32 %v126, %v128
    %v132 = vadd.f32 %v18, %v130
    %v133 = vadd.f32 %v19, %v131
    %134 = vst.msk [vmem:[#allocation2] sm:$0xff] %vm24, %v132
    %135 = vst.msk [vmem:[#allocation2 + $0x8] sm:$0xff] %vm24, %v133
    // Predicated region
    $region18: #{tpu_custom_call.1} parent=1 // pred_check
      _
    $region19: #{tpu_custom_call.1} parent=1 // pred_check_branch
      %137 = sbr.rel (0) target = $region21
    $region20: #{tpu_custom_call.1} parent=1 // pred_region
      %139 = vsyncadd [#allocation3], 0
      %s140 = sshll.u32 [#allocation2], 4
      %s141 = int_to_ptr.vmem [resolvable:$true] %s140
      %s142 = sshll.u32 %s4, 4
      %s143 = int_to_ptr.hbm [resolvable:$true] %s142
      %148 = dma.vmem_to_hbm [thread:$0]  %s141, 256, %s143, [#allocation3], 128, 128, 8
    $region21: #{tpu_custom_call.1} parent=1 // pred_fallthru
      _
    // Predicated region
    $region22: #{tpu_custom_call.1} parent=1 // pred_check
      _
    $region23: #{tpu_custom_call.1} parent=1 // pred_check_branch
      %150 = sbr.rel (0) target = $region25
    $region24: #{tpu_custom_call.1} parent=1 // pred_region
      %152 = dma.done [#allocation3], 256
    $region25: #{tpu_custom_call.1} parent=1 // pred_fallthru
      _
    %153 = vsyncpa [#allocation3], 1

// kernel: tpu_custom_call.1
$region0: #{tpu_custom_call.1}
  #allocation0 [shape = 'u32[]', space=smem, size = 0x4, offset = 0x4, fixed_abs, tag = 'smem constant byte address 0x4 - core index']
  #allocation1 [shape = 'u32[72,128]{1,0:T(1,128)}', space=vmem, size = 0x9000, scoped, tag = 'internal scratch']
  %s0 = inlined_call_operand.vmem [shape: f32[16,32], index: 0, kind: input, shape index: {}]
  %s1 = inlined_call_operand.vmem [shape: f32[32,8], index: 1, kind: input, shape index: {}]
  %s2 = inlined_call_operand.vmem [shape: f32[8,32], index: 2, kind: input, shape index: {}]
  %s3 = inlined_call_operand.vmem [shape: f32[1,32], index: 3, kind: input, shape index: {}]
  %s4 = inlined_call_operand.hbm [shape: f32[16,32], index: 4, kind: output, shape index: {}]
  %s5 = sld [smem:[#allocation0]]
  $region26: #{tpu_custom_call.1} parent=0
    _
  %s7 = ssub.s32 1, %s5
  %s8 = scalar_select 0, %s7, %s5
  $region1: #{tpu_custom_call.1} parent=0
    #allocation2 [shape = 'u8[8192]{0}', space=vmem, size = 0x2000, scoped, tag = 'output window, operand 0, single buffered']
    #allocation3 [shape = 's32[1]{0}', space=sflag, size = 0x4, scoped, tag = 'scoped memory for tpu_custom_call.1']
    %9 = vsyncpa [#allocation3], 0
    // Predicated region
    $region2: #{tpu_custom_call.1} parent=1 // pred_check
      _
    $region3: #{tpu_custom_call.1} parent=1 // pred_check_branch
      %11 = sbr.rel (0) target = $region5
    $region4: #{tpu_custom_call.1} parent=1 // pred_region
      _
    $region5: #{tpu_custom_call.1} parent=1 // pred_fallthru
      _
    // Predicated region
    $region6: #{tpu_custom_call.1} parent=1 // pred_check
      _
    $region7: #{tpu_custom_call.1} parent=1 // pred_check_branch
      %13 = sbr.rel (0) target = $region9
    $region8: #{tpu_custom_call.1} parent=1 // pred_region
      _
    $region9: #{tpu_custom_call.1} parent=1 // pred_fallthru
      _
    // Predicated region
    $region10: #{tpu_custom_call.1} parent=1 // pred_check
      _
    $region11: #{tpu_custom_call.1} parent=1 // pred_check_branch
      %15 = sbr.rel (0) target = $region13
    $region12: #{tpu_custom_call.1} parent=1 // pred_region
      _
    $region13: #{tpu_custom_call.1} parent=1 // pred_fallthru
      _
    // Predicated region
    $region14: #{tpu_custom_call.1} parent=1 // pred_check
      _
    $region15: #{tpu_custom_call.1} parent=1 // pred_check_branch
      %17 = sbr.rel (0) target = $region17
    $region16: #{tpu_custom_call.1} parent=1 // pred_region
      _
    $region17: #{tpu_custom_call.1} parent=1 // pred_fallthru
      _
    %v18 = vld [vmem:[%s0] sm:$0xff]
    %v19 = vld [vmem:[%s0 + $0x8] sm:$0xff]
    %v20 = vld [vmem:[%s1] sm:$0xff]
    %v21 = vld [vmem:[%s1 + $0x8] sm:$0xff]
    %v22 = vld [vmem:[%s1 + $0x10] sm:$0xff]
    %v23 = vld [vmem:[%s1 + $0x18] sm:$0xff]
    %vm24 = vcmask 261120
    %v26 = vsel %vm24, %v18, 0
    %v29 = vsel %vm24, %v19, 0
    %31 = vmatpush.msra.mxu0 0.0
    %32 = vmatpush.msra.mxu0 0.0
    %33 = vmatpush.msra.mxu0 0.0
    %34 = vmatpush.msra.mxu0 0.0
    %35 = vmatpush.msra.mxu0 0.0
    %36 = vmatpush.msra.mxu0 0.0
    %37 = vmatpush.msra.mxu0 0.0
    %38 = vmatpush.msra.mxu0 0.0
    %39 = vmatpush.msra.mxu0 0.0
    %40 = vmatpush.msra.mxu0 0.0
    %41 = vmatpush.msra.mxu0 0.0
    %42 = vmatpush.msra.mxu0 0.0
    %43 = vmatpush.msra.mxu0 %v23
    %44 = vmatpush.msra.mxu0 %v22
    %45 = vmatpush.msra.mxu0 %v21
    %46 = vmatpush.msra.mxu0 %v20
    %47 = vmatmul.f32.gmra.mxu0 %v26
    %v48 = vpop.f32.mrf.mxu0
    %v49 = vadd.f32 0.0, %v48
    %50 = vmatmul.f32.gmra.mxu0 %v29
    %v51 = vpop.f32.mrf.mxu0
    %v52 = vadd.f32 0.0, %v51
    %53 = vdwg.mxu0
    %v54 = vld [vmem:[%s2] sm:$0xff]
    %vm55 = vcmask 64512
    %v57 = vsel %vm55, %v49, 0
    %v60 = vsel %vm55, %v52, 0
    %62 = vmatpush.msra.mxu0 0.0
    %63 = vmatpush.msra.mxu0 0.0
    %64 = vmatpush.msra.mxu0 0.0
    %65 = vmatpush.msra.mxu0 0.0
    %66 = vmatpush.msra.mxu0 0.0
    %67 = vmatpush.msra.mxu0 0.0
    %68 = vmatpush.msra.mxu0 0.0
    %69 = vmatpush.msra.mxu0 0.0
    %70 = vmatpush.msra.mxu0 0.0
    %71 = vmatpush.msra.mxu0 0.0
    %72 = vmatpush.msra.mxu0 0.0
    %73 = vmatpush.msra.mxu0 0.0
    %74 = vmatpush.msra.mxu0 0.0
    %75 = vmatpush.msra.mxu0 0.0
    %76 = vmatpush.msra.mxu0 0.0
    %77 = vmatpush.msra.mxu0 %v54
    %78 = vmatmul.f32.gmra.mxu0 %v57
    %v79 = vpop.f32.mrf.mxu0
    %v80 = vadd.f32 0.0, %v79
    %81 = vmatmul.f32.gmra.mxu0 %v60
    %v82 = vpop.f32.mrf.mxu0
    %v83 = vadd.f32 0.0, %v82
    %84 = vdwg.mxu0
    %v85 = vmul.f32 %v80, %v80
    %v86 = vmul.f32 %v83, %v83
    %v87 = vsel %vm24, %v85, 0.0
    %88 = vadd.xlane.f32.xlu0 %v87
    %v89 = vpop.xlane.xlu0 %88
    %v90 = vsel %vm24, %v86, 0.0
    %91 = vadd.xlane.f32.xlu0 %v90
    %v92 = vpop.xlane.xlu0 %91
    %v93 = vrcp.pop 32.0
    %v94 = vmul.f32 32.0, %v93
    %v95 = vsub.f32 1.0, %v94
    %v96 = vmul.f32 %v93, %v95
    %v97 = vadd.f32 %v93, %v96
    %vm98 = vweird.f32 %v93
    %v99 = vsel %vm98, %v93, %v97
    %v100 = vmul.f32 %v89, %v99
    %v101 = vmul.f32 %v92, %v99
    %v102 = vadd.f32 %v100, 1e-06
    %v103 = vadd.f32 %v101, 1e-06
    %v104 = vrsqrt.pop %v102
    %v105 = vmul.f32 %v104, %v102
    %v106 = vmul.f32 %v105, %v104
    %v107 = vmul.f32 0.5, %v106
    %v108 = vsub.f32 1.5, %v107
    %v109 = vmul.f32 %v104, %v108
    %vm110 = vweird.f32 %v102
    %vm111 = vweird.f32 %v104
    %vm112 = vmor %vm110, %vm111
    %v113 = vsel %vm112, %v104, %v109
    %v114 = vrsqrt.pop %v103
    %v115 = vmul.f32 %v114, %v103
    %v116 = vmul.f32 %v115, %v114
    %v117 = vmul.f32 0.5, %v116
    %v118 = vsub.f32 1.5, %v117
    %v119 = vmul.f32 %v114, %v118
    %vm120 = vweird.f32 %v103
    %vm121 = vweird.f32 %v114
    %vm122 = vmor %vm120, %vm121
    %v123 = vsel %vm122, %v114, %v119
    %v124 = vld [vmem:[%s3] sm:$0x1]
    %v125 = vmul.f32 %v80, %v113
    %v126 = vmul.f32 %v83, %v123
    %v128 = vperm.slane %v124, 0
    %v130 = vmul.f32 %v125, %v128
    %v131 = vmul.f32 %v126, %v128
    %v132 = vadd.f32 %v18, %v130
    %v133 = vadd.f32 %v19, %v131
    %134 = vst.msk [vmem:[#allocation2] sm:$0xff] %vm24, %v132
    %135 = vst.msk [vmem:[#allocation2 + $0x8] sm:$0xff] %vm24, %v133
    // Predicated region
    $region18: #{tpu_custom_call.1} parent=1 // pred_check
      _
    $region19: #{tpu_custom_call.1} parent=1 // pred_check_branch
      %137 = sbr.rel (0) target = $region21
    $region20: #{tpu_custom_call.1} parent=1 // pred_region
      %139 = vsyncadd [#allocation3], 0
      %s140 = sshll.u32 [#allocation2], 4
      %s141 = int_to_ptr.vmem [resolvable:$true] %s140
      %s142 = sshll.u32 %s4, 4
      %s143 = int_to_ptr.hbm [resolvable:$true] %s142
      %148 = dma.vmem_to_hbm [thread:$0]  %s141, 256, %s143, [#allocation3], 128, 128, 8
    $region21: #{tpu_custom_call.1} parent=1 // pred_fallthru
      _
    // Predicated region
    $region22: #{tpu_custom_call.1} parent=1 // pred_check
      _
    $region23: #{tpu_custom_call.1} parent=1 // pred_check_branch
      %150 = sbr.rel (0) target = $region25
    $region24: #{tpu_custom_call.1} parent=1 // pred_region
      %152 = dma.done [#allocation3], 256
    $region25: #{tpu_custom_call.1} parent=1 // pred_fallthru
      _
    %153 = vsyncpa [#allocation3], 1

</llo_original>
